<compile_context>
chip_gen: v6e
topology: v6e:2x2x1
jax: 0.10.0
libtpu: 0.0.40
codegen_flags: <defaults>
</compile_context>

<pallas_src>
import jax
import jax.numpy as jnp
from jax import lax
from jax.experimental import pallas as pl
from jax.experimental.pallas import tpu as pltpu

EPS = 1e-5


def _cln_kernel(t_ref, x_ref, p_ref, o_ref):
    # t_ref: (B,) in SMEM (scalar-prefetched)
    # x_ref: (TS, D) tile of one batch element (leading batch dim squeezed)
    # p_ref: (4, D) stacked params [w_w, w_b, b_w, b_b] (f32)
    # o_ref: (TS, D)
    x = x_ref[...].astype(jnp.float32)

    # LayerNorm statistics along the last dim (matches the PyTorch forward:
    # var = E[x^2] - E[x]^2, biased). Padding rows (ragged last S-tile) only
    # produce garbage rows that Pallas discards; D is never padded.
    mean = jnp.mean(x, axis=-1, keepdims=True)
    var = jnp.mean(x * x, axis=-1, keepdims=True) - mean * mean
    x_norm = (x - mean) * lax.rsqrt(var + EPS)

    # Conditioning: gamma/beta = Linear(1, D)(t) for this batch element.
    # Recomputed per tile — O(D) VPU work, negligible next to the (TS, D)
    # normalization, and keeps the kernel a single fused pass over x.
    b = pl.program_id(0)
    t = t_ref[b]
    p = p_ref[...]                               # (4, D) f32
    gamma = p[0:1, :] * t + p[1:2, :]            # (1, D)
    beta = p[2:3, :] * t + p[3:4, :]             # (1, D)

    o_ref[...] = (gamma * x_norm + beta).astype(o_ref.dtype)


def _pick_seq_tile(S, D, itemsize, target_bytes=2 << 20):
    """Sequence-tile rows so one (TS, D) tile is ~target_bytes (<= S)."""
    rows = max(1, target_bytes // (D * itemsize))
    if rows >= S:
        return S                                  # full S -> always a legal block
    rows = (rows // 8) * 8                        # keep sublane-aligned
    return max(8, rows)


def conditional_layer_norm(x, time, w_w, w_b, b_w, b_b):
    """x: (B, S, D); time: (B,).
    w_w, w_b: weight-Linear params (D,), (D,);  b_w, b_b: bias-Linear params."""
    B, S, D = x.shape
    TS = _pick_seq_tile(S, D, jnp.dtype(x.dtype).itemsize)
    n_s = pl.cdiv(S, TS)

    time_f32 = time.astype(jnp.float32).reshape(B)
    params = jnp.stack(
        [w_w.reshape(D), w_b.reshape(D), b_w.reshape(D), b_b.reshape(D)], axis=0
    ).astype(jnp.float32)                         # (4, D)

    grid_spec = pltpu.PrefetchScalarGridSpec(
        num_scalar_prefetch=1,                    # -> time lands in SMEM once
        grid=(B, n_s),
        in_specs=[
            # x tile: leading batch dim squeezed -> kernel sees (TS, D)
            pl.BlockSpec((pl.Squeezed(), TS, D), lambda b, s, t: (b, s, 0)),
            # single stacked parameter slab, same block every step (resident)
            pl.BlockSpec((4, D), lambda b, s, t: (0, 0)),
        ],
        out_specs=pl.BlockSpec((pl.Squeezed(), TS, D), lambda b, s, t: (b, s, 0)),
    )

    return pl.pallas_call(
        _cln_kernel,
        out_shape=jax.ShapeDtypeStruct((B, S, D), x.dtype),
        grid_spec=grid_spec,
        compiler_params=pltpu.CompilerParams(
            dimension_semantics=("parallel", "parallel"),
            vmem_limit_bytes=32 * 1024 * 1024,
        ),
    )(time_f32, x, params)


def _reference(x, time, w_w, w_b, b_w, b_b):
    # Pure-JAX replica of the PyTorch forward (x 3-D, time 1-D path).
    mean = x.mean(axis=-1, keepdims=True)
    var = (x ** 2).mean(axis=-1, keepdims=True) - mean ** 2
    xn = (x - mean) / jnp.sqrt(var + EPS)
    t = time.astype(x.dtype)[:, None]                      # (B, 1)
    weight = t * w_w[None, :] + w_b[None, :]               # (B, D)
    bias = t * b_w[None, :] + b_b[None, :]                 # (B, D)
    # x.dim()==3, time(after unsqueeze).dim()==2 -> unsqueeze(-2)
    return weight[:, None, :] * xn + bias[:, None, :]


if __name__ == "__main__":
    # Small shapes; D = 128 keeps the last dim lane-dense (full vreg lanes,
    # unmasked vector stores).
    B, S, D = 2, 8, 128
    key = jax.random.PRNGKey(0)
    kx, kt, k1, k2, k3, k4 = jax.random.split(key, 6)

    x = jax.random.normal(kx, (B, S, D), dtype=jnp.float32)
    time = jax.random.uniform(kt, (B,), dtype=jnp.float32)

    # Synthetic nn.Linear(1, D) x 2 parameters:
    #   weight Linear: weight (D,1) -> w_w (D,), bias -> w_b (D,)
    #   bias   Linear: weight (D,1) -> b_w (D,), bias -> b_b (D,)
    w_w = jax.random.normal(k1, (D,), dtype=jnp.float32) * 0.1
    w_b = jax.random.normal(k2, (D,), dtype=jnp.float32) * 0.1 + 1.0
    b_w = jax.random.normal(k3, (D,), dtype=jnp.float32) * 0.1
    b_b = jax.random.normal(k4, (D,), dtype=jnp.float32) * 0.1

    out = conditional_layer_norm(x, time, w_w, w_b, b_w, b_b)
    out = jax.block_until_ready(out)

    ref = _reference(x, time, w_w, w_b, b_w, b_b)
    assert out.shape == (B, S, D)
    assert jnp.allclose(out, ref, atol=1e-5, rtol=1e-5), (
        float(jnp.max(jnp.abs(out - ref))))

    print("KERNEL_OK")
</pallas_src>

<mosaic_0001>
module attributes {stable_mosaic.version = 11 : i64} {
  func.func @_cln_kernel(%arg0: i32, %arg1: i32, %arg2: memref<2xf32, #tpu.memory_space<smem>>, %arg3: memref<1x8x128xf32, #tpu.memory_space<vmem>>, %arg4: memref<4x128xf32, #tpu.memory_space<vmem>>, %arg5: memref<1x8x128xf32, #tpu.memory_space<vmem>>) attributes {dimension_semantics = [#tpu.dimension_semantics<parallel>, #tpu.dimension_semantics<parallel>], iteration_bounds = array<i64: 2, 1>, scalar_prefetch = 1 : i64, scratch_operands = 0 : i64, tpu.core_type = #tpu.core_type<tc>, window_params = [{transform_indices = @transform_0, window_bounds = array<i64: 1, 8, 128>}, {pipeline_mode = #tpu.pipeline_mode<synchronous>, transform_indices = @transform_1, window_bounds = array<i64: 4, 128>}, {transform_indices = @transform_2, window_bounds = array<i64: 1, 8, 128>}]} {
    %c0 = arith.constant 0 : index
    %c0_0 = arith.constant 0 : index
    %c0_1 = arith.constant 0 : index
    %0 = vector.load %arg3[%c0, %c0_0, %c0_1] : memref<1x8x128xf32, #tpu.memory_space<vmem>>, vector<1x8x128xf32>
    %1 = vector.shape_cast %0 : vector<1x8x128xf32> to vector<8x128xf32>
    %cst = arith.constant dense<0.000000e+00> : vector<8xf32>
    %2 = vector.multi_reduction <add>, %1, %cst [1] : vector<8x128xf32> to vector<8xf32>
    %3 = vector.shape_cast %2 : vector<8xf32> to vector<8x1xf32>
    %cst_2 = arith.constant 1.280000e+02 : f32
    %4 = vector.broadcast %cst_2 : f32 to vector<8x1xf32>
    %5 = arith.divf %3, %4 : vector<8x1xf32>
    %6 = arith.mulf %1, %1 : vector<8x128xf32>
    %cst_3 = arith.constant dense<0.000000e+00> : vector<8xf32>
    %7 = vector.multi_reduction <add>, %6, %cst_3 [1] : vector<8x128xf32> to vector<8xf32>
    %8 = vector.shape_cast %7 : vector<8xf32> to vector<8x1xf32>
    %cst_4 = arith.constant 1.280000e+02 : f32
    %9 = vector.broadcast %cst_4 : f32 to vector<8x1xf32>
    %10 = arith.divf %8, %9 : vector<8x1xf32>
    %11 = arith.mulf %5, %5 : vector<8x1xf32>
    %12 = arith.subf %10, %11 : vector<8x1xf32>
    %13 = vector.broadcast %5 : vector<8x1xf32> to vector<8x128xf32>
    %14 = arith.subf %1, %13 : vector<8x128xf32>
    %cst_5 = arith.constant 9.99999974E-6 : f32
    %15 = vector.broadcast %cst_5 : f32 to vector<8x1xf32>
    %16 = arith.addf %12, %15 : vector<8x1xf32>
    %17 = math.rsqrt %16 : vector<8x1xf32>
    %18 = vector.broadcast %17 : vector<8x1xf32> to vector<8x128xf32>
    %19 = arith.mulf %14, %18 : vector<8x128xf32>
    %20 = arith.index_cast %arg0 : i32 to index
    %21 = memref.load %arg2[%20] : memref<2xf32, #tpu.memory_space<smem>>
    %c0_6 = arith.constant 0 : index
    %c0_7 = arith.constant 0 : index
    %22 = vector.load %arg4[%c0_6, %c0_7] : memref<4x128xf32, #tpu.memory_space<vmem>>, vector<4x128xf32>
    %23 = vector.extract_strided_slice %22 {offsets = [0, 0], sizes = [1, 128], strides = [1, 1]} : vector<4x128xf32> to vector<1x128xf32>
    %24 = vector.broadcast %21 : f32 to vector<1x128xf32>
    %25 = arith.mulf %23, %24 : vector<1x128xf32>
    %26 = vector.extract_strided_slice %22 {offsets = [1, 0], sizes = [1, 128], strides = [1, 1]} : vector<4x128xf32> to vector<1x128xf32>
    %27 = arith.addf %25, %26 : vector<1x128xf32>
    %28 = vector.extract_strided_slice %22 {offsets = [2, 0], sizes = [1, 128], strides = [1, 1]} : vector<4x128xf32> to vector<1x128xf32>
    %29 = vector.broadcast %21 : f32 to vector<1x128xf32>
    %30 = arith.mulf %28, %29 : vector<1x128xf32>
    %31 = vector.extract_strided_slice %22 {offsets = [3, 0], sizes = [1, 128], strides = [1, 1]} : vector<4x128xf32> to vector<1x128xf32>
    %32 = arith.addf %30, %31 : vector<1x128xf32>
    %33 = vector.broadcast %27 : vector<1x128xf32> to vector<8x128xf32>
    %34 = arith.mulf %33, %19 : vector<8x128xf32>
    %35 = vector.broadcast %32 : vector<1x128xf32> to vector<8x128xf32>
    %36 = arith.addf %34, %35 : vector<8x128xf32>
    %c0_8 = arith.constant 0 : index
    %c0_9 = arith.constant 0 : index
    %c0_10 = arith.constant 0 : index
    %37 = vector.load %arg5[%c0_8, %c0_9, %c0_10] : memref<1x8x128xf32, #tpu.memory_space<vmem>>, vector<1x8x128xf32>
    %38 = vector.shape_cast %37 : vector<1x8x128xf32> to vector<8x128xf32>
    %39 = vector.shape_cast %36 : vector<8x128xf32> to vector<1x8x128xf32>
    tpu.vector_store %arg5[%c0_8, %c0_9, %c0_10], %39 {strides = array<i32>} : memref<1x8x128xf32, #tpu.memory_space<vmem>>, vector<1x8x128xf32>,
    return
  }
  func.func @transform_0(%arg0: i32, %arg1: i32, %arg2: memref<2xf32, #tpu.memory_space<smem>>) -> (i32, i32, i32) {
    %c0_i32 = arith.constant 0 : i32
    %c0_i32_0 = arith.constant 0 : i32
    return %arg0, %arg1, %c0_i32 : i32, i32, i32
  }
  func.func @transform_1(%arg0: i32, %arg1: i32, %arg2: memref<2xf32, #tpu.memory_space<smem>>) -> (i32, i32) {
    %c0_i32 = arith.constant 0 : i32
    %c0_i32_0 = arith.constant 0 : i32
    %c0_i32_1 = arith.constant 0 : i32
    return %c0_i32, %c0_i32_0 : i32, i32
  }
  func.func @transform_2(%arg0: i32, %arg1: i32, %arg2: memref<2xf32, #tpu.memory_space<smem>>) -> (i32, i32, i32) {
    %c0_i32 = arith.constant 0 : i32
    %c0_i32_0 = arith.constant 0 : i32
    return %arg0, %arg1, %c0_i32 : i32, i32, i32
  }
}

</mosaic_0001>

<llo_original>
// kernel: tpu_custom_call.1
$region0: #{tpu_custom_call.1}
  #allocation0 [shape = 'u32[]', space=smem, size = 0x4, offset = 0x4, fixed_abs, tag = 'smem constant byte address 0x4 - core index']
  #allocation1 [shape = 'u32[144,128]{1,0:T(1,128)}', space=vmem, size = 0x12000, scoped, tag = 'internal scratch']
  #allocation2 [shape = 's32[1]{0}', space=sflag, size = 0x4, scoped, tag = 'scoped memory for tpu_custom_call.1']
  #allocation3 [shape = 'u8[512]{0}', space=smem, size = 0x200, scoped, tag = 'prefetched SMEM operand 0']
  %s0 = inlined_call_operand.hbm [shape: f32[2], index: 0, kind: input, shape index: {}]
  %s1 = inlined_call_operand.hbm [shape: f32[2,8,128], index: 1, kind: input, shape index: {}]
  %s2 = inlined_call_operand.hbm [shape: f32[4,128], index: 2, kind: input, shape index: {}]
  %s3 = inlined_call_operand.hbm [shape: f32[2,8,128], index: 3, kind: output, shape index: {}]
  %s4 = sld [smem:[#allocation0]]
  $region49: #{tpu_custom_call.1} parent=0
    _
  %s6 = ssub.s32 1, %s4
  %s7 = scalar_select 0, %s6, %s4
  %9 = dma.hbm_to_smem %s0, 16, [#allocation3], [#allocation2]
  %10 = dma.done [#allocation2], 16
  %11 = sfence
  $region1: #{tpu_custom_call.1} parent=0
    #allocation4 [shape = 'u8[8192]{0}', space=vmem, size = 0x2000, scoped, tag = 'input window, operand 1']
    #allocation5 [shape = 's32[2]{0}', space=sflag, size = 0x8, scoped, tag = 'scoped memory for tpu_custom_call.1']
    #allocation6 [shape = 's32[2]{0}', space=sflag, size = 0x8, scoped, tag = 'scoped memory for tpu_custom_call.1']
    #allocation7 [shape = 'u8[2048]{0}', space=vmem, size = 0x800, scoped, tag = 'input window, operand 2, single buffered']
    #allocation8 [shape = 's32[1]{0}', space=sflag, size = 0x4, scoped, tag = 'scoped memory for tpu_custom_call.1']
    #allocation9 [shape = 'u8[8192]{0}', space=vmem, size = 0x2000, scoped, tag = 'output window, operand 0']
    %12 = vsyncpa [#allocation5], 0
    %s13 = scalar_lea.sflag [#allocation5], 1
    %14 = vsyncpa %s13, 0
    %15 = vsyncpa [#allocation8], 0
    %16 = vsyncpa [#allocation6], 0
    %s17 = scalar_lea.sflag [#allocation6], 1
    %18 = vsyncpa %s17, 0
    loop: start=0, step=1, limit=4
    $region2: #{tpu_custom_call.1} parent=1 // loop_pre_header
      _
    $region3: #{tpu_custom_call.1} parent=1 // loop_header
      %s20 = sphi 0, %s24
      %p21 = scmp.ge.s32.totalorder %s20, 4
      %s27 = sphi 0, %s39
      %s28 = sphi 0, %s35
      %s29 = sphi 0, %s27
      %s30 = sphi 0, %s28
      %s31 = sphi 0, %s29
      %s32 = sphi 0, %s30
      %s44 = sphi 0, %s46
      %s47 = sphi 0, %s44
      %s48 = sphi 0, %s47
      %s64 = sphi 0, %s48
      %s68 = sphi 0, %s68
      %s70 = sphi 0, %s68
      %s71 = sphi 0, %s70
      %s85 = sphi 0, %s71
      %s93 = sphi 0, %s95
      %s96 = sphi 0, %s93
      %s97 = sphi 0, %s96
      %s113 = sphi 0, %s97
    $region4: #{tpu_custom_call.1} parent=1 // loop_header_branch
      %23 = sbr.rel (%p21) target = $region8
    $region5: #{tpu_custom_call.1} parent=1 // loop_body
      %s25 = ssub.s32 %s20, 1
      %s26 = ssub.s32 %s20, 2
      %s33 = sadd.s32 1, %s28
      %p34 = scmp.ge.s32.totalorder %s33, 1
      %s35 = scalar_select %p34, 0, %s33
      %s36 = sadd.s32 1, %s27
      %s37 = scalar_select %p34, %s36, %s27
      %p38 = scmp.ge.s32.totalorder %s37, 2
      %s39 = scalar_select %p38, 0, %s37
      %s40 = ssub.s32 %s27, %s39
      %s41 = ssub.s32 %s28, %s35
      %s42 = sor.u32 %s40, %s41
      %p43 = scmp.eq.s32.totalorder %s42, 0
      %s45 = sadd.s32 %s44, 1
      %s46 = scalar_select %p43, %s44, %s45
      %p49 = pneg %p43
      %p50 = scmp.eq.s32.totalorder %s20, 1
      %p51 = por %p49, %p50
      %p52 = scmp.ne.s32.totalorder %s44, %s47
      %p53 = scmp.eq.s32.totalorder %s20, 0
      %p54 = por %p52, %p53
      %p55 = scmp.ne.s32.totalorder %s44, %s47
      %p56 = scmp.eq.s32.totalorder %s25, 1
      %p57 = por %p55, %p56
      %p58 = scmp.ne.s32.totalorder %s47, %s48
      %p59 = scmp.eq.s32.totalorder %s25, 0
      %p60 = por %p58, %p59
      %p61 = scmp.ne.s32.totalorder %s47, %s48
      %p62 = scmp.eq.s32.totalorder %s26, 1
      %p63 = por %p61, %p62
      %p65 = scmp.ne.s32.totalorder %s48, %s64
      %p66 = scmp.eq.s32.totalorder %s26, 0
      %p67 = por %p65, %p66
      %s69 = sadd.s32 %s68, 1
      %p72 = scmp.eq.s32.totalorder %s20, 1
      %p73 = scmp.ne.s32.totalorder %s68, %s70
      %p74 = scmp.eq.s32.totalorder %s20, 0
      %p75 = por %p73, %p74
      %p76 = scmp.ne.s32.totalorder %s68, %s70
      %p77 = scmp.eq.s32.totalorder %s25, 1
      %p78 = por %p76, %p77
      %p79 = scmp.ne.s32.totalorder %s70, %s71
      %p80 = scmp.eq.s32.totalorder %s25, 0
      %p81 = por %p79, %p80
      %p82 = scmp.ne.s32.totalorder %s70, %s71
      %p83 = scmp.eq.s32.totalorder %s26, 1
      %p84 = por %p82, %p83
      %p86 = scmp.ne.s32.totalorder %s71, %s85
      %p87 = scmp.eq.s32.totalorder %s26, 0
      %p88 = por %p86, %p87
      %s89 = ssub.s32 %s27, %s39
      %s90 = ssub.s32 %s28, %s35
      %s91 = sor.u32 %s89, %s90
      %p92 = scmp.eq.s32.totalorder %s91, 0
      %s94 = sadd.s32 %s93, 1
      %s95 = scalar_select %p92, %s93, %s94
      %p98 = pneg %p92
      %p99 = scmp.eq.s32.totalorder %s20, 1
      %p100 = por %p98, %p99
      %p101 = scmp.ne.s32.totalorder %s93, %s96
      %p102 = scmp.eq.s32.totalorder %s20, 0
      %p103 = por %p101, %p102
      %p104 = scmp.ne.s32.totalorder %s93, %s96
      %p105 = scmp.eq.s32.totalorder %s25, 1
      %p106 = por %p104, %p105
      %p107 = scmp.ne.s32.totalorder %s96, %s97
      %p108 = scmp.eq.s32.totalorder %s25, 0
      %p109 = por %p107, %p108
      %p110 = scmp.ne.s32.totalorder %s96, %s97
      %p111 = scmp.eq.s32.totalorder %s26, 1
      %p112 = por %p110, %p111
      %p114 = scmp.ne.s32.totalorder %s97, %s113
      %p115 = scmp.eq.s32.totalorder %s26, 0
      %p116 = por %p114, %p115
      %p117 = scmp.le.s32.totalorder 1, %s20
      %p118 = scmp.lt.s32.totalorder %s20, 3
      %p119 = pnand %p117, %p118
      %p120 = pneg %p119
      // Predicated region
      $region9: #{tpu_custom_call.1} parent=5 // pred_check
        _
      $region10: #{tpu_custom_call.1} parent=5 // pred_check_branch
        %122 = sbr.rel (%p119) target = $region12
      $region11: #{tpu_custom_call.1} parent=5 // pred_region
        %s123 = ssub.s32 %s20, 1
        // Predicated region
        $region13: #{tpu_custom_call.1} parent=11 // pred_check
          %p124 = pneg %p81
        $region14: #{tpu_custom_call.1} parent=11 // pred_check_branch
          %126 = sbr.rel (%p124) target = $region16
        $region15: #{tpu_custom_call.1} parent=11 // pred_region
          %s128 = ssub.s32 64, 64
          %129 = vsyncadd [#allocation8], %s128
          %s131 = sshll.u32 [#allocation7], 4
          %s132 = int_to_ptr.vmem [resolvable:$true] %s131
          %134 = dma.hbm_to_vmem [thread:$0]  %s2, 64, %s132, [#allocation8]
        $region16: #{tpu_custom_call.1} parent=11 // pred_fallthru
          _
      $region12: #{tpu_custom_call.1} parent=5 // pred_fallthru
        _
      %p135 = scmp.lt.s32.totalorder %s20, 2
      // Predicated region
      $region17: #{tpu_custom_call.1} parent=5 // pred_check
        %p136 = pneg %p135
      $region18: #{tpu_custom_call.1} parent=5 // pred_check_branch
        %138 = sbr.rel (%p136) target = $region20
      $region19: #{tpu_custom_call.1} parent=5 // pred_region
        // Predicated region
        $region21: #{tpu_custom_call.1} parent=19 // pred_check
          %p139 = pneg %p54
        $region22: #{tpu_custom_call.1} parent=19 // pred_check_branch
          %141 = sbr.rel (%p139) target = $region24
        $region23: #{tpu_custom_call.1} parent=19 // pred_region
          %s142 = sand.u32 %s44, 1
          %s143 = scalar_lea.sflag [#allocation5], %s142
          %s144 = sand.u32 %s44, 1
          %s145 = smul.addr %s144, 8
          %s146 = scalar_lea.vmem [#allocation4], %s145
          %s148 = ssub.s32 128, 128
          %149 = vsyncadd %s143, %s148
          %s150 = sadd.s32 %s28, %s27
          %s151 = smul.addr %s150, 128
          %s152 = scalar_lea.hbm %s1, %s151
          %s154 = sshll.u32 %s146, 4
          %s155 = int_to_ptr.vmem [resolvable:$true] %s154
          %157 = dma.hbm_to_vmem [thread:$0]  %s152, 128, %s155, %s143
        $region24: #{tpu_custom_call.1} parent=19 // pred_fallthru
          _
      $region20: #{tpu_custom_call.1} parent=5 // pred_fallthru
        _
      %p158 = scmp.le.s32.totalorder 1, %s20
      %p159 = scmp.lt.s32.totalorder %s20, 3
      %p160 = pnand %p158, %p159
      %p161 = pneg %p160
      // Predicated region
      $region25: #{tpu_custom_call.1} parent=5 // pred_check
        _
      $region26: #{tpu_custom_call.1} parent=5 // pred_check_branch
        %163 = sbr.rel (%p160) target = $region28
      $region27: #{tpu_custom_call.1} parent=5 // pred_region
        %s164 = ssub.s32 %s20, 1
        %s165 = sand.u32 %s47, 1
        %s166 = scalar_lea.sflag [#allocation5], %s165
        %s167 = sand.u32 %s47, 1
        %s168 = smul.addr %s167, 8
        %s169 = scalar_lea.vmem [#allocation4], %s168
        // Predicated region
        $region29: #{tpu_custom_call.1} parent=27 // pred_check
          %p170 = pneg %p60
        $region30: #{tpu_custom_call.1} parent=27 // pred_check_branch
          %172 = sbr.rel (%p170) target = $region32
        $region31: #{tpu_custom_call.1} parent=27 // pred_region
          %173 = dma.done %s166, 128
        $region32: #{tpu_custom_call.1} parent=27 // pred_fallthru
          _
        // Predicated region
        $region33: #{tpu_custom_call.1} parent=27 // pred_check
          %p174 = pneg %p81
        $region34: #{tpu_custom_call.1} parent=27 // pred_check_branch
          %176 = sbr.rel (%p174) target = $region36
        $region35: #{tpu_custom_call.1} parent=27 // pred_region
          %177 = dma.done [#allocation8], 64
        $region36: #{tpu_custom_call.1} parent=27 // pred_fallthru
          _
        %s178 = sand.u32 %s47, 1
        %s179 = scalar_lea.sflag [#allocation5], %s178
        %s180 = sand.u32 %s47, 1
        %s181 = smul.addr %s180, 8
        %s182 = scalar_lea.vmem [#allocation4], %s181
        %p183 = pneg %p60
        %p184 = pneg %p57
        %p185 = pneg %p81
        %p186 = pneg %p78
        %p187 = pneg %p109
        %p188 = pneg %p106
        %s189 = sand.u32 %s96, 1
        %s190 = scalar_lea.sflag [#allocation6], %s189
        %s191 = sand.u32 %s96, 1
        %s192 = smul.addr %s191, 8
        %s193 = scalar_lea.vmem [#allocation9], %s192
        %v194 = vld [vmem:[%s169] sm:$0xff]
        %195 = vadd.xlane.f32.xlu0 %v194
        %v196 = vpop.xlane.xlu0 %195
        %v197 = vrcp.pop 128.0
        %v198 = vmul.f32 %v196, %v197
        %v199 = vmul.f32 %v194, %v194
        %200 = vadd.xlane.f32.xlu0 %v199
        %v201 = vpop.xlane.xlu0 %200
        %v202 = vmul.f32 %v201, %v197
        %v203 = vmul.f32 %v198, %v198
        %v204 = vsub.f32 %v202, %v203
        %v205 = vsub.f32 %v194, %v198
        %v206 = vadd.f32 %v204, 1e-05
        %v207 = vrsqrt.pop %v206
        %v208 = vmul.f32 %v205, %v207
        %s209 = sld [smem:[#allocation3 + %s29]]
        %v210 = vld [vmem:[#allocation7] sm:$0xf]
        %v211 = vstv %s209
        %v212 = vmul.f32 %v210, %v211
        %v214 = vrot.slane %v210, 1
        %v216 = vadd.f32 %v212, %v214
        %v217 = vlaneseq
        %v218 = vshrl.u32 %v217, 7
        %v219 = vsub.s32 0, %v218
        %v220 = vrot.slane %v216, %v219
        %v221 = vmul.f32 %v220, %v208
        %v222 = vlaneseq
        %v223 = vshrl.u32 %v222, 7
        %v224 = vsub.s32 2, %v223
        %v225 = vrot.slane %v216, %v224
        %v226 = vadd.f32 %v221, %v225
        %227 = vst [vmem:[%s193] sm:$0xff] %v226
        %s228 = sand.u32 %s96, 1
        %s229 = scalar_lea.sflag [#allocation6], %s228
        %s230 = sand.u32 %s96, 1
        %s231 = smul.addr %s230, 8
        %s232 = scalar_lea.vmem [#allocation9], %s231
        // Predicated region
        $region37: #{tpu_custom_call.1} parent=27 // pred_check
          %p233 = pneg %p106
        $region38: #{tpu_custom_call.1} parent=27 // pred_check_branch
          %235 = sbr.rel (%p233) target = $region40
        $region39: #{tpu_custom_call.1} parent=27 // pred_region
          %s237 = ssub.s32 128, 128
          %238 = vsyncadd %s229, %s237
          %s239 = sadd.s32 %s30, %s29
          %s240 = smul.addr %s239, 128
          %s241 = scalar_lea.hbm %s3, %s240
          %s243 = sshll.u32 %s232, 4
          %s244 = int_to_ptr.vmem [resolvable:$true] %s243
          %246 = dma.vmem_to_hbm [thread:$0]  %s244, 128, %s241, %s229
        $region40: #{tpu_custom_call.1} parent=27 // pred_fallthru
          _
      $region28: #{tpu_custom_call.1} parent=5 // pred_fallthru
        _
      %p247 = scmp.le.s32.totalorder 2, %s20
      // Predicated region
      $region41: #{tpu_custom_call.1} parent=5 // pred_check
        %p248 = pneg %p247
      $region42: #{tpu_custom_call.1} parent=5 // pred_check_branch
        %250 = sbr.rel (%p248) target = $region44
      $region43: #{tpu_custom_call.1} parent=5 // pred_region
        %s251 = ssub.s32 %s20, 2
        // Predicated region
        $region45: #{tpu_custom_call.1} parent=43 // pred_check
          %p252 = pneg %p112
        $region46: #{tpu_custom_call.1} parent=43 // pred_check_branch
          %254 = sbr.rel (%p252) target = $region48
        $region47: #{tpu_custom_call.1} parent=43 // pred_region
          %s255 = sand.u32 %s97, 1
          %s256 = scalar_lea.sflag [#allocation6], %s255
          %s257 = sand.u32 %s97, 1
          %s258 = smul.addr %s257, 8
          %s259 = scalar_lea.vmem [#allocation9], %s258
          %260 = dma.done %s256, 128
        $region48: #{tpu_custom_call.1} parent=43 // pred_fallthru
          _
      $region44: #{tpu_custom_call.1} parent=5 // pred_fallthru
        _
    $region6: #{tpu_custom_call.1} parent=1 // loop_footer
      %s24 = sadd.s32 1, %s20
    $region7: #{tpu_custom_call.1} parent=1 // loop_footer_branch
      %19 = sbr.rel target = $region3
    $region8: #{tpu_custom_call.1} parent=1 // loop_exit
      _
    %261 = vsyncpa [#allocation5], 1
    %s262 = scalar_lea.sflag [#allocation5], 1
    %263 = vsyncpa %s262, 1
    %264 = vsyncpa [#allocation8], 1
    %265 = vsyncpa [#allocation6], 1
    %s266 = scalar_lea.sflag [#allocation6], 1
    %267 = vsyncpa %s266, 1

</llo_original>
